<compile_context>
chip_gen: v5e
topology: v5e:2x2
jax: 0.10.0
libtpu: 0.0.40
codegen_flags: <defaults>
</compile_context>

<pallas_src>
import functools

import jax
import jax.numpy as jnp
from jax.experimental import pallas as pl
from jax.experimental.pallas import tpu as pltpu

_LANES = 128
# Per-block f32-equivalent budget.  At L = 128 this gives 4096-row tiles
# (2 MiB per input block); double-buffered in+out (+64 KiB seg) is ~8-10 MiB
# of live VMEM -> no vmem_limit override needed on v5e/v6e/v7x.
_MAX_BLOCK_BYTES = 2 * 1024 * 1024
# Below this many input bytes a single fused XLA pass beats the pallas_call
# launch + pipeline prologue (typical lambeq batches: tens of sentences).
_SMALL_BATCH_BYTES = 256 * 1024


def _round_up(x, m):
    return -(-x // m) * m


def _refine_reciprocal(denom):
    # EUP approximate reciprocal + one Newton-Raphson step -> ~f32 accuracy.
    inv = pl.reciprocal(denom, approx=True)
    return inv * (2.0 - denom * inv)


def _folded_norm_kernel(seg_ref, x_ref, out_ref, *, probabilities: bool):
    """Normalize F = 128//D circuits packed per 128-lane row.

    seg_ref is an (L, L) bf16 block-diagonal ones matrix, so (v @ seg)[r, l]
    is the sum of the width-D segment (circuit) lane l belongs to, already
    broadcast across its own segment.  The f32 segmented sum is computed as a
    2-term hi/lo bf16 split (two plain bf16 MXU passes, f32 accumulation):
    relative error < 1e-5, far cheaper than precision=HIGHEST (~6 passes).
    """
    x = x_ref[...].astype(jnp.float32)
    v = x if probabilities else x * x          # real-valued |c|^2 == c*c
    seg = seg_ref[...]
    v_hi = v.astype(jnp.bfloat16)
    v_lo = (v - v_hi.astype(jnp.float32)).astype(jnp.bfloat16)
    denom = (jnp.dot(v_hi, seg, preferred_element_type=jnp.float32)
             + jnp.dot(v_lo, seg, preferred_element_type=jnp.float32))
    out_ref[...] = (x * _refine_reciprocal(denom)).astype(out_ref.dtype)


def _row_norm_kernel(x_ref, out_ref, *, probabilities: bool):
    """One circuit per row (D already a multiple of 128 -> lane dense)."""
    x = x_ref[...].astype(jnp.float32)
    v = x if probabilities else x * x
    denom = jnp.sum(v, axis=-1, keepdims=True)
    out_ref[...] = (x * _refine_reciprocal(denom)).astype(out_ref.dtype)


def _normalize_jax(circuit_evals, *, probabilities: bool):
    if probabilities:
        return circuit_evals / jnp.sum(circuit_evals, axis=-1, keepdims=True)
    return circuit_evals / jnp.sum(jnp.square(jnp.abs(circuit_evals)),
                                   axis=-1, keepdims=True)


def pennylane_model_forward(circuit_evals, *, probabilities: bool = True,
                            normalize: bool = True,
                            weights_dtype=jnp.float32,
                            use_pallas=None):
    """Pallas implementation of PennyLaneModel.get_diagram_output post-eval math.

    circuit_evals: (B, D) stack of raw per-diagram circuit outputs
    (D = 2**n_qubits real-valued probability entries per circuit).
    use_pallas: None -> auto (size-based dispatch), True/False -> force.
    """
    B, D = circuit_evals.shape
    in_dtype = jnp.dtype(circuit_evals.dtype)
    out_dtype = jnp.dtype(weights_dtype) if probabilities else in_dtype

    if not normalize:
        out = circuit_evals.astype(out_dtype)
        return out[..., 0] if D == 1 else out

    # ---- small-batch fast path ----------------------------------------------
    if use_pallas is None:
        use_pallas = circuit_evals.size * 4 >= _SMALL_BATCH_BYTES
    if not use_pallas:
        out = _normalize_jax(circuit_evals,
                             probabilities=probabilities).astype(out_dtype)
        return out[..., 0] if D == 1 else out

    # ---- lane-dense folding --------------------------------------------------
    if D < _LANES and _LANES % D == 0:
        fold = _LANES // D                     # circuits per 128-lane row
    elif D % _LANES == 0:
        fold = 1                               # already lane dense
    else:
        # TODO(synk): non-power-of-two D never occurs for 2**n_qubits outputs;
        # fall back to the fused XLA path rather than padding lanes.
        out = _normalize_jax(circuit_evals,
                             probabilities=probabilities).astype(out_dtype)
        return out[..., 0] if D == 1 else out
    L = fold * D

    row_align = 16 if (in_dtype.itemsize < 4 or out_dtype.itemsize < 4) else 8

    # Folded row count; keep at least one aligned block's worth so block_shape
    # never exceeds the (folded) array extent.
    Bf = max(-(-B // fold), row_align)
    Bp = Bf * fold
    x = circuit_evals
    if Bp != B:
        # Only when B is not already a multiple of 128 // D: pad rows with 1.0
        # (finite, harmless denominator); stripped again below.
        x = jnp.pad(x, ((0, Bp - B), (0, 0)), constant_values=1.0)
    x = x.reshape(Bf, L)                       # contiguous reshape: no HBM copy

    # ---- row tiling over the folded batch axis -------------------------------
    cap_rows = max(row_align,
                   (_MAX_BLOCK_BYTES // (L * 4)) // row_align * row_align)
    # Target >= 4 grid steps so dimension_semantics=("parallel",) shards the
    # batch across v7x's two TensorCores, while keeping tiles big enough to
    # amortise the ~0.35 us per-step overhead for large batches.
    tile_rows = max(row_align,
                    min(cap_rows, _round_up(-(-Bf // 4), row_align)))
    grid = (pl.cdiv(Bf, tile_rows),)           # ragged last block handled by Pallas

    compiler_params = pltpu.CompilerParams(dimension_semantics=("parallel",))
    io_spec = pl.BlockSpec((tile_rows, L), lambda i: (i, 0))

    if fold > 1:
        # bf16 block-diagonal ones matrix (0/1 exactly representable);
        # constant index_map -> DMA'd once regardless of grid length.
        seg = jnp.kron(jnp.eye(fold, dtype=jnp.float32),
                       jnp.ones((D, D), jnp.float32)).astype(jnp.bfloat16)
        stacked = pl.pallas_call(
            functools.partial(_folded_norm_kernel, probabilities=probabilities),
            out_shape=jax.ShapeDtypeStruct((Bf, L), out_dtype),
            grid=grid,
            in_specs=[pl.BlockSpec((L, L), lambda i: (0, 0)),
                      io_spec],
            out_specs=io_spec,
            compiler_params=compiler_params,
        )(seg, x)
    else:
        stacked = pl.pallas_call(
            functools.partial(_row_norm_kernel, probabilities=probabilities),
            out_shape=jax.ShapeDtypeStruct((Bf, L), out_dtype),
            grid=grid,
            in_specs=[io_spec],
            out_specs=io_spec,
            compiler_params=compiler_params,
        )(x)

    # ---- unfold (free reshape) / strip fold padding / squeeze ----------------
    out = stacked.reshape(Bp, D)
    if Bp != B:
        out = out[:B]
    if D == 1:                                 # torch `stacked.squeeze(-1)`
        out = out[:, 0]
    return out


def _reference_forward(circuit_evals, *, probabilities=True, normalize=True,
                       weights_dtype=jnp.float32):
    """Pure-JAX reference mirroring the PyTorch semantics."""
    x = circuit_evals
    if normalize:
        x = _normalize_jax(x, probabilities=probabilities)
    if x.shape[-1] == 1:
        x = x[..., 0]
    if probabilities:
        x = x.astype(weights_dtype)
    return x


if __name__ == "__main__":
    key = jax.random.PRNGKey(0)
    k_w, k_a, k_b, k_c, k_d = jax.random.split(key, 5)

    # initialise_weights(): one uniform[0, 1) scalar per symbol.
    n_symbols = 6
    weights = jax.random.uniform(k_w, (n_symbols,), dtype=jnp.float32)

    # TODO(synk): PennyLane circuit evaluation (p_circ.eval()) is a quantum
    # statevector simulation of arbitrary parameterised circuits with no Pallas
    # equivalent; emulate each circuit's raw (un-normalised, non-negative)
    # probability output deterministically from the symbol weights.
    def emulate_circuit_evals(k, batch, dim):
        angles = jax.random.uniform(k, (batch, dim), dtype=jnp.float32) * 2.0 * jnp.pi
        theta = weights[jnp.arange(batch * dim) % n_symbols].reshape(batch, dim)
        return jnp.square(jnp.sin(angles + theta)) + 1e-3       # (batch, dim) >= 0

    # --- 1. large batch: auto-dispatch to the Pallas kernel (fold=4, grid=4) --
    B1, n_qubits = 4096, 5
    D1 = 2 ** n_qubits
    ev1 = emulate_circuit_evals(k_a, B1, D1)

    out1 = jax.block_until_ready(
        pennylane_model_forward(ev1, probabilities=True, normalize=True,
                                weights_dtype=weights.dtype))
    ref1 = _reference_forward(ev1, probabilities=True, normalize=True,
                              weights_dtype=weights.dtype)
    assert out1.shape == (B1, D1), out1.shape
    assert out1.dtype == weights.dtype, out1.dtype
    assert jnp.allclose(out1, ref1, rtol=2e-5, atol=1e-6), "probs mismatch"
    assert jnp.allclose(jnp.sum(out1, axis=-1), 1.0, atol=1e-5)

    # states path (probabilities=False): c / sum(|c|^2)
    # TODO(synk): real PennyLane statevectors are complex; the kernel handles
    # only the real-valued case.
    out1s = jax.block_until_ready(
        pennylane_model_forward(ev1, probabilities=False, normalize=True,
                                weights_dtype=weights.dtype))
    ref1s = _reference_forward(ev1, probabilities=False, normalize=True,
                               weights_dtype=weights.dtype)
    assert jnp.allclose(out1s, ref1s, rtol=2e-5, atol=1e-6), "states mismatch"

    # --- 2. typical small lambeq batch: fused-XLA fast path -------------------
    B2, D2 = 8, 32
    ev2 = emulate_circuit_evals(k_b, B2, D2)
    out2 = jax.block_until_ready(
        pennylane_model_forward(ev2, probabilities=True, normalize=True,
                                weights_dtype=weights.dtype))
    ref2 = _reference_forward(ev2, probabilities=True, normalize=True,
                              weights_dtype=weights.dtype)
    assert out2.shape == (B2, D2) and jnp.allclose(out2, ref2, rtol=2e-5, atol=1e-6)
    assert jnp.allclose(jnp.sum(out2, axis=-1), 1.0, atol=1e-5)

    # --- 3. forced-Pallas: fold padding (B % (128//D) != 0) + tiny batch ------
    B3, D3 = 20, 8
    ev3 = emulate_circuit_evals(k_c, B3, D3)
    out3 = jax.block_until_ready(
        pennylane_model_forward(ev3, probabilities=True, normalize=True,
                                weights_dtype=weights.dtype, use_pallas=True))
    ref3 = _reference_forward(ev3, probabilities=True, normalize=True,
                              weights_dtype=weights.dtype)
    assert out3.shape == (B3, D3), out3.shape
    assert jnp.allclose(out3, ref3, rtol=2e-5, atol=1e-6), "padded-fold mismatch"

    # --- 4. forced-Pallas: fold == 1 row kernel (D multiple of 128) -----------
    B4, D4 = 64, 128
    ev4 = emulate_circuit_evals(k_d, B4, D4)
    out4 = jax.block_until_ready(
        pennylane_model_forward(ev4, probabilities=True, normalize=True,
                                weights_dtype=weights.dtype, use_pallas=True))
    ref4 = _reference_forward(ev4, probabilities=True, normalize=True,
                              weights_dtype=weights.dtype)
    assert out4.shape == (B4, D4), out4.shape
    assert jnp.allclose(out4, ref4, rtol=2e-5, atol=1e-6), "row-kernel mismatch"

    print("KERNEL_OK")
</pallas_src>

<mosaic_0001>
module attributes {stable_mosaic.version = 11 : i64} {
  func.func @_folded_norm_kernel(%arg0: i32, %arg1: memref<128x128xbf16, #tpu.memory_space<vmem>>, %arg2: memref<256x128xf32, #tpu.memory_space<vmem>>, %arg3: memref<256x128xf32, #tpu.memory_space<vmem>>) attributes {dimension_semantics = [#tpu.dimension_semantics<parallel>], iteration_bounds = array<i64: 4>, scalar_prefetch = 0 : i64, scratch_operands = 0 : i64, tpu.core_type = #tpu.core_type<tc>, window_params = [{pipeline_mode = #tpu.pipeline_mode<synchronous>, transform_indices = @transform_0, window_bounds = array<i64: 128, 128>}, {transform_indices = @transform_1, window_bounds = array<i64: 256, 128>}, {transform_indices = @transform_2, window_bounds = array<i64: 256, 128>}]} {
    %c0 = arith.constant 0 : index
    %c0_0 = arith.constant 0 : index
    %0 = vector.load %arg2[%c0, %c0_0] : memref<256x128xf32, #tpu.memory_space<vmem>>, vector<256x128xf32>
    %c0_1 = arith.constant 0 : index
    %c0_2 = arith.constant 0 : index
    %1 = vector.load %arg1[%c0_1, %c0_2] : memref<128x128xbf16, #tpu.memory_space<vmem>>, vector<128x128xbf16>
    %2 = arith.truncf %0 : vector<256x128xf32> to vector<256x128xbf16>
    %3 = arith.extf %2 : vector<256x128xbf16> to vector<256x128xf32>
    %4 = arith.subf %0, %3 : vector<256x128xf32>
    %5 = arith.truncf %4 : vector<256x128xf32> to vector<256x128xbf16>
    %cst = arith.constant dense<0.000000e+00> : vector<256x128xf32>
    %6 = tpu.matmul %2, %1, %cst {dimension_numbers = #tpu.dot_dimension_numbers<[1], [0], [0], [1], [0, 0, 1, 1], [], []>} : vector<256x128xbf16>, vector<128x128xbf16>, vector<256x128xf32> -> vector<256x128xf32>
    %cst_3 = arith.constant dense<0.000000e+00> : vector<256x128xf32>
    %7 = tpu.matmul %5, %1, %cst_3 {dimension_numbers = #tpu.dot_dimension_numbers<[1], [0], [0], [1], [0, 0, 1, 1], [], []>} : vector<256x128xbf16>, vector<128x128xbf16>, vector<256x128xf32> -> vector<256x128xf32>
    %8 = arith.addf %6, %7 : vector<256x128xf32>
    %9 = tpu.reciprocal %8 {approx = true} : vector<256x128xf32> -> vector<256x128xf32>
    %10 = arith.mulf %8, %9 : vector<256x128xf32>
    %cst_4 = arith.constant 2.000000e+00 : f32
    %11 = vector.broadcast %cst_4 : f32 to vector<256x128xf32>
    %12 = arith.subf %11, %10 : vector<256x128xf32>
    %13 = arith.mulf %9, %12 : vector<256x128xf32>
    %14 = arith.mulf %0, %13 : vector<256x128xf32>
    %c0_5 = arith.constant 0 : index
    %c0_6 = arith.constant 0 : index
    %15 = vector.load %arg3[%c0_5, %c0_6] : memref<256x128xf32, #tpu.memory_space<vmem>>, vector<256x128xf32>
    tpu.vector_store %arg3[%c0_5, %c0_6], %14 {strides = array<i32>} : memref<256x128xf32, #tpu.memory_space<vmem>>, vector<256x128xf32>,
    return
  }
  func.func @transform_0(%arg0: i32) -> (i32, i32) {
    %c0_i32 = arith.constant 0 : i32
    %c0_i32_0 = arith.constant 0 : i32
    %c0_i32_1 = arith.constant 0 : i32
    return %c0_i32, %c0_i32_0 : i32, i32
  }
  func.func @transform_1(%arg0: i32) -> (i32, i32) {
    %c0_i32 = arith.constant 0 : i32
    %c0_i32_0 = arith.constant 0 : i32
    return %arg0, %c0_i32 : i32, i32
  }
  func.func @transform_2(%arg0: i32) -> (i32, i32) {
    %c0_i32 = arith.constant 0 : i32
    %c0_i32_0 = arith.constant 0 : i32
    return %arg0, %c0_i32 : i32, i32
  }
}

</mosaic_0001>

<llo_original>
// kernel: tpu_custom_call.1
$region0: #{tpu_custom_call.1}
  #allocation0 [shape = 'u32[]', space=smem, size = 0x4, offset = 0x4, fixed_abs, tag = 'smem constant byte address 0x4 - core index']
  #allocation1 [shape = 'u32[72,128]{1,0:T(1,128)}', space=vmem, size = 0x9000, scoped, tag = 'internal scratch']
  %s0 = inlined_call_operand.hbm [shape: bf16[128,128], index: 0, kind: input, shape index: {}]
  %s1 = inlined_call_operand.hbm [shape: f32[1024,128], index: 1, kind: input, shape index: {}]
  %s2 = inlined_call_operand.hbm [shape: f32[1024,128], index: 2, kind: output, shape index: {}]
  %s3 = sld [smem:[#allocation0]]
  $region49: #{tpu_custom_call.1} parent=0
    _
  %s5 = ssub.s32 1, %s3
  %s6 = scalar_select 0, %s5, %s3
  $region1: #{tpu_custom_call.1} parent=0
    #allocation2 [shape = 'u8[32768]{0}', space=vmem, size = 0x8000, scoped, tag = 'input window, operand 0, single buffered']
    #allocation3 [shape = 's32[2]{0}', space=sflag, size = 0x8, scoped, tag = 'scoped memory for tpu_custom_call.1']
    #allocation4 [shape = 's32[2]{0}', space=sflag, size = 0x8, scoped, tag = 'scoped memory for tpu_custom_call.1']
    #allocation5 [shape = 'u8[262144]{0}', space=vmem, size = 0x40000, scoped, tag = 'input window, operand 1']
    #allocation6 [shape = 's32[2]{0}', space=sflag, size = 0x8, scoped, tag = 'scoped memory for tpu_custom_call.1']
    #allocation7 [shape = 'u8[262144]{0}', space=vmem, size = 0x40000, scoped, tag = 'output window, operand 0']
    %7 = vsyncpa [#allocation3], 0
    %8 = vsyncpa [#allocation6], 0
    %s9 = scalar_lea.sflag [#allocation6], 1
    %10 = vsyncpa %s9, 0
    %11 = vsyncpa [#allocation4], 0
    %s12 = scalar_lea.sflag [#allocation4], 1
    %13 = vsyncpa %s12, 0
    loop: start=0, step=1, limit=6
    $region2: #{tpu_custom_call.1} parent=1 // loop_pre_header
      _
    $region3: #{tpu_custom_call.1} parent=1 // loop_header
      %s15 = sphi 0, %s19
      %p16 = scmp.ge.s32.totalorder %s15, 6
      %s23 = sphi 0, %s23
      %s25 = sphi 0, %s23
      %s26 = sphi 0, %s25
      %s40 = sphi 0, %s26
      %s46 = sphi 0, %s48
      %s49 = sphi 0, %s46
      %s50 = sphi 0, %s49
      %s66 = sphi 0, %s50
      %s72 = sphi 0, %s74
      %s75 = sphi 0, %s72
      %s76 = sphi 0, %s75
      %s92 = sphi 0, %s76
    $region4: #{tpu_custom_call.1} parent=1 // loop_header_branch
      %18 = sbr.rel (%p16) target = $region8
    $region5: #{tpu_custom_call.1} parent=1 // loop_body
      %s20 = ssub.s32 %s15, 1
      %s21 = ssub.s32 %s15, 2
      %s22 = sadd.s32 %s15, 1
      %s24 = sadd.s32 %s23, 1
      %p27 = scmp.eq.s32.totalorder %s15, 3
      %p28 = scmp.ne.s32.totalorder %s23, %s25
      %p29 = scmp.eq.s32.totalorder %s15, 0
      %p30 = por %p28, %p29
      %p31 = scmp.ne.s32.totalorder %s23, %s25
      %p32 = scmp.eq.s32.totalorder %s20, 3
      %p33 = por %p31, %p32
      %p34 = scmp.ne.s32.totalorder %s25, %s26
      %p35 = scmp.eq.s32.totalorder %s20, 0
      %p36 = por %p34, %p35
      %p37 = scmp.ne.s32.totalorder %s25, %s26
      %p38 = scmp.eq.s32.totalorder %s21, 3
      %p39 = por %p37, %p38
      %p41 = scmp.ne.s32.totalorder %s26, %s40
      %p42 = scmp.eq.s32.totalorder %s21, 0
      %p43 = por %p41, %p42
      %s44 = ssub.s32 %s15, %s22
      %p45 = scmp.eq.s32.totalorder %s44, 0
      %s47 = sadd.s32 %s46, 1
      %s48 = scalar_select %p45, %s46, %s47
      %p51 = pneg %p45
      %p52 = scmp.eq.s32.totalorder %s15, 3
      %p53 = por %p51, %p52
      %p54 = scmp.ne.s32.totalorder %s46, %s49
      %p55 = scmp.eq.s32.totalorder %s15, 0
      %p56 = por %p54, %p55
      %p57 = scmp.ne.s32.totalorder %s46, %s49
      %p58 = scmp.eq.s32.totalorder %s20, 3
      %p59 = por %p57, %p58
      %p60 = scmp.ne.s32.totalorder %s49, %s50
      %p61 = scmp.eq.s32.totalorder %s20, 0
      %p62 = por %p60, %p61
      %p63 = scmp.ne.s32.totalorder %s49, %s50
      %p64 = scmp.eq.s32.totalorder %s21, 3
      %p65 = por %p63, %p64
      %p67 = scmp.ne.s32.totalorder %s50, %s66
      %p68 = scmp.eq.s32.totalorder %s21, 0
      %p69 = por %p67, %p68
      %s70 = ssub.s32 %s15, %s22
      %p71 = scmp.eq.s32.totalorder %s70, 0
      %s73 = sadd.s32 %s72, 1
      %s74 = scalar_select %p71, %s72, %s73
      %p77 = pneg %p71
      %p78 = scmp.eq.s32.totalorder %s15, 3
      %p79 = por %p77, %p78
      %p80 = scmp.ne.s32.totalorder %s72, %s75
      %p81 = scmp.eq.s32.totalorder %s15, 0
      %p82 = por %p80, %p81
      %p83 = scmp.ne.s32.totalorder %s72, %s75
      %p84 = scmp.eq.s32.totalorder %s20, 3
      %p85 = por %p83, %p84
      %p86 = scmp.ne.s32.totalorder %s75, %s76
      %p87 = scmp.eq.s32.totalorder %s20, 0
      %p88 = por %p86, %p87
      %p89 = scmp.ne.s32.totalorder %s75, %s76
      %p90 = scmp.eq.s32.totalorder %s21, 3
      %p91 = por %p89, %p90
      %p93 = scmp.ne.s32.totalorder %s76, %s92
      %p94 = scmp.eq.s32.totalorder %s21, 0
      %p95 = por %p93, %p94
      %p96 = scmp.le.s32.totalorder 1, %s15
      %p97 = scmp.lt.s32.totalorder %s15, 5
      %p98 = pnand %p96, %p97
      %p99 = pneg %p98
      // Predicated region
      $region9: #{tpu_custom_call.1} parent=5 // pred_check
        _
      $region10: #{tpu_custom_call.1} parent=5 // pred_check_branch
        %101 = sbr.rel (%p98) target = $region12
      $region11: #{tpu_custom_call.1} parent=5 // pred_region
        %s102 = ssub.s32 %s15, 1
        // Predicated region
        $region13: #{tpu_custom_call.1} parent=11 // pred_check
          %p103 = pneg %p36
        $region14: #{tpu_custom_call.1} parent=11 // pred_check_branch
          %105 = sbr.rel (%p103) target = $region16
        $region15: #{tpu_custom_call.1} parent=11 // pred_region
          %107 = vsyncadd [#allocation3], 0
          %s108 = sshll.u32 %s0, 4
          %s109 = int_to_ptr.hbm [resolvable:$true] %s108
          %s110 = sshll.u32 [#allocation2], 4
          %s111 = int_to_ptr.vmem [resolvable:$true] %s110
          %116 = dma.hbm_to_vmem [thread:$0]  %s109, 1024, %s111, [#allocation3], 64, 64, 4
        $region16: #{tpu_custom_call.1} parent=11 // pred_fallthru
          _
      $region12: #{tpu_custom_call.1} parent=5 // pred_fallthru
        _
      %p117 = scmp.lt.s32.totalorder %s15, 4
      // Predicated region
      $region17: #{tpu_custom_call.1} parent=5 // pred_check
        %p118 = pneg %p117
      $region18: #{tpu_custom_call.1} parent=5 // pred_check_branch
        %120 = sbr.rel (%p118) target = $region20
      $region19: #{tpu_custom_call.1} parent=5 // pred_region
        // Predicated region
        $region21: #{tpu_custom_call.1} parent=19 // pred_check
          %p121 = pneg %p56
        $region22: #{tpu_custom_call.1} parent=19 // pred_check_branch
          %123 = sbr.rel (%p121) target = $region24
        $region23: #{tpu_custom_call.1} parent=19 // pred_region
          %s124 = sand.u32 %s46, 1
          %s125 = scalar_lea.sflag [#allocation6], %s124
          %s126 = sand.u32 %s46, 1
          %s127 = smul.addr %s126, 256
          %s128 = scalar_lea.vmem [#allocation5], %s127
          %s129 = smul.u32 32, %s15
          %131 = vsyncadd %s125, 0
          %s132 = smul.addr %s129, 8
          %s133 = scalar_lea.hbm %s1, %s132
          %s134 = sshll.u32 %s133, 4
          %s135 = int_to_ptr.hbm [resolvable:$true] %s134
          %s136 = sshll.u32 %s128, 4
          %s137 = int_to_ptr.vmem [resolvable:$true] %s136
          %142 = dma.hbm_to_vmem [thread:$0]  %s135, 4096, %s137, %s125, 128, 128, 8
        $region24: #{tpu_custom_call.1} parent=19 // pred_fallthru
          _
      $region20: #{tpu_custom_call.1} parent=5 // pred_fallthru
        _
      %p143 = scmp.le.s32.totalorder 1, %s15
      %p144 = scmp.lt.s32.totalorder %s15, 5
      %p145 = pnand %p143, %p144
      %p146 = pneg %p145
      // Predicated region
      $region25: #{tpu_custom_call.1} parent=5 // pred_check
        _
      $region26: #{tpu_custom_call.1} parent=5 // pred_check_branch
        %148 = sbr.rel (%p145) target = $region28
      $region27: #{tpu_custom_call.1} parent=5 // pred_region
        %s149 = ssub.s32 %s15, 1
        // Predicated region
        $region29: #{tpu_custom_call.1} parent=27 // pred_check
          %p150 = pneg %p36
        $region30: #{tpu_custom_call.1} parent=27 // pred_check_branch
          %152 = sbr.rel (%p150) target = $region32
        $region31: #{tpu_custom_call.1} parent=27 // pred_region
          %154 = dma.done [#allocation3], 1024
        $region32: #{tpu_custom_call.1} parent=27 // pred_fallthru
          _
        %s155 = sand.u32 %s49, 1
        %s156 = scalar_lea.sflag [#allocation6], %s155
        %s157 = sand.u32 %s49, 1
        %s158 = smul.addr %s157, 256
        %s159 = scalar_lea.vmem [#allocation5], %s158
        // Predicated region
        $region33: #{tpu_custom_call.1} parent=27 // pred_check
          %p160 = pneg %p62
        $region34: #{tpu_custom_call.1} parent=27 // pred_check_branch
          %162 = sbr.rel (%p160) target = $region36
        $region35: #{tpu_custom_call.1} parent=27 // pred_region
          %164 = dma.done %s156, 4096
        $region36: #{tpu_custom_call.1} parent=27 // pred_fallthru
          _
        %p165 = pneg %p36
        %p166 = pneg %p33
        %s167 = sand.u32 %s49, 1
        %s168 = scalar_lea.sflag [#allocation6], %s167
        %s169 = sand.u32 %s49, 1
        %s170 = smul.addr %s169, 256
        %s171 = scalar_lea.vmem [#allocation5], %s170
        %p172 = pneg %p62
        %p173 = pneg %p59
        %p174 = pneg %p88
        %p175 = pneg %p85
        %s176 = sand.u32 %s75, 1
        %s177 = scalar_lea.sflag [#allocation4], %s176
        %s178 = sand.u32 %s75, 1
        %s179 = smul.addr %s178, 256
        %s180 = scalar_lea.vmem [#allocation7], %s179
        %s181 = smul.u32 32, %s20
        %s182 = smul.u32 32, %s20
        %v183 = vld [vmem:[%s159] sm:$0xff]
        %v184 = vld [vmem:[%s159 + $0x8] sm:$0xff]
        %v185 = vld [vmem:[%s159 + $0x10] sm:$0xff]
        %v186 = vld [vmem:[%s159 + $0x18] sm:$0xff]
        %v187 = vld [vmem:[%s159 + $0x20] sm:$0xff]
        %v188 = vld [vmem:[%s159 + $0x28] sm:$0xff]
        %v189 = vld [vmem:[%s159 + $0x30] sm:$0xff]
        %v190 = vld [vmem:[%s159 + $0x38] sm:$0xff]
        %v191 = vld [vmem:[%s159 + $0x40] sm:$0xff]
        %v192 = vld [vmem:[%s159 + $0x48] sm:$0xff]
        %v193 = vld [vmem:[%s159 + $0x50] sm:$0xff]
        %v194 = vld [vmem:[%s159 + $0x58] sm:$0xff]
        %v195 = vld [vmem:[%s159 + $0x60] sm:$0xff]
        %v196 = vld [vmem:[%s159 + $0x68] sm:$0xff]
        %v197 = vld [vmem:[%s159 + $0x70] sm:$0xff]
        %v198 = vld [vmem:[%s159 + $0x78] sm:$0xff]
        %v199 = vld [vmem:[%s159 + $0x80] sm:$0xff]
        %v200 = vld [vmem:[%s159 + $0x88] sm:$0xff]
        %v201 = vld [vmem:[%s159 + $0x90] sm:$0xff]
        %v202 = vld [vmem:[%s159 + $0x98] sm:$0xff]
        %v203 = vld [vmem:[%s159 + $0xa0] sm:$0xff]
        %v204 = vld [vmem:[%s159 + $0xa8] sm:$0xff]
        %v205 = vld [vmem:[%s159 + $0xb0] sm:$0xff]
        %v206 = vld [vmem:[%s159 + $0xb8] sm:$0xff]
        %v207 = vld [vmem:[%s159 + $0xc0] sm:$0xff]
        %v208 = vld [vmem:[%s159 + $0xc8] sm:$0xff]
        %v209 = vld [vmem:[%s159 + $0xd0] sm:$0xff]
        %v210 = vld [vmem:[%s159 + $0xd8] sm:$0xff]
        %v211 = vld [vmem:[%s159 + $0xe0] sm:$0xff]
        %v212 = vld [vmem:[%s159 + $0xe8] sm:$0xff]
        %v213 = vld [vmem:[%s159 + $0xf0] sm:$0xff]
        %v214 = vld [vmem:[%s159 + $0xf8] sm:$0xff]
        %v215 = vld [vmem:[#allocation2] sm:$0xf]
        %v216 = vld [vmem:[#allocation2 + $0x4] sm:$0xf]
        %v217 = vld [vmem:[#allocation2 + $0x8] sm:$0xf]
        %v218 = vld [vmem:[#allocation2 + $0xc] sm:$0xf]
        %v219 = vld [vmem:[#allocation2 + $0x10] sm:$0xf]
        %v220 = vld [vmem:[#allocation2 + $0x14] sm:$0xf]
        %v221 = vld [vmem:[#allocation2 + $0x18] sm:$0xf]
        %v222 = vld [vmem:[#allocation2 + $0x1c] sm:$0xf]
        %v223 = vld [vmem:[#allocation2 + $0x20] sm:$0xf]
        %v224 = vld [vmem:[#allocation2 + $0x24] sm:$0xf]
        %v225 = vld [vmem:[#allocation2 + $0x28] sm:$0xf]
        %v226 = vld [vmem:[#allocation2 + $0x2c] sm:$0xf]
        %v227 = vld [vmem:[#allocation2 + $0x30] sm:$0xf]
        %v228 = vld [vmem:[#allocation2 + $0x34] sm:$0xf]
        %v229 = vld [vmem:[#allocation2 + $0x38] sm:$0xf]
        %v230 = vld [vmem:[#allocation2 + $0x3c] sm:$0xf]
        %v231 = vpack.c.bf16 %v183, %v183
        %v232 = vpack.c.bf16 %v184, %v184
        %v233 = vpack.c.bf16 %v185, %v185
        %v234 = vpack.c.bf16 %v186, %v186
        %v235 = vpack.c.bf16 %v187, %v187
        %v236 = vpack.c.bf16 %v188, %v188
        %v237 = vpack.c.bf16 %v189, %v189
        %v238 = vpack.c.bf16 %v190, %v190
        %v239 = vpack.c.bf16 %v191, %v191
        %v240 = vpack.c.bf16 %v192, %v192
        %v241 = vpack.c.bf16 %v193, %v193
        %v242 = vpack.c.bf16 %v194, %v194
        %v243 = vpack.c.bf16 %v195, %v195
        %v244 = vpack.c.bf16 %v196, %v196
        %v245 = vpack.c.bf16 %v197, %v197
        %v246 = vpack.c.bf16 %v198, %v198
        %v247 = vpack.c.bf16 %v199, %v199
        %v248 = vpack.c.bf16 %v200, %v200
        %v249 = vpack.c.bf16 %v201, %v201
        %v250 = vpack.c.bf16 %v202, %v202
        %v251 = vpack.c.bf16 %v203, %v203
        %v252 = vpack.c.bf16 %v204, %v204
        %v253 = vpack.c.bf16 %v205, %v205
        %v254 = vpack.c.bf16 %v206, %v206
        %v255 = vpack.c.bf16 %v207, %v207
        %v256 = vpack.c.bf16 %v208, %v208
        %v257 = vpack.c.bf16 %v209, %v209
        %v258 = vpack.c.bf16 %v210, %v210
        %v259 = vpack.c.bf16 %v211, %v211
        %v260 = vpack.c.bf16 %v212, %v212
        %v261 = vpack.c.bf16 %v213, %v213
        %v262 = vpack.c.bf16 %v214, %v214
        %v263 = vunpack.c.l.bf16 %v231
        %v264 = vunpack.c.l.bf16 %v232
        %v265 = vunpack.c.l.bf16 %v233
        %v266 = vunpack.c.l.bf16 %v234
        %v267 = vunpack.c.l.bf16 %v235
        %v268 = vunpack.c.l.bf16 %v236
        %v269 = vunpack.c.l.bf16 %v237
        %v270 = vunpack.c.l.bf16 %v238
        %v271 = vunpack.c.l.bf16 %v239
        %v272 = vunpack.c.l.bf16 %v240
        %v273 = vunpack.c.l.bf16 %v241
        %v274 = vunpack.c.l.bf16 %v242
        %v275 = vunpack.c.l.bf16 %v243
        %v276 = vunpack.c.l.bf16 %v244
        %v277 = vunpack.c.l.bf16 %v245
        %v278 = vunpack.c.l.bf16 %v246
        %v279 = vunpack.c.l.bf16 %v247
        %v280 = vunpack.c.l.bf16 %v248
        %v281 = vunpack.c.l.bf16 %v249
        %v282 = vunpack.c.l.bf16 %v250
        %v283 = vunpack.c.l.bf16 %v251
        %v284 = vunpack.c.l.bf16 %v252
        %v285 = vunpack.c.l.bf16 %v253
        %v286 = vunpack.c.l.bf16 %v254
        %v287 = vunpack.c.l.bf16 %v255
        %v288 = vunpack.c.l.bf16 %v256
        %v289 = vunpack.c.l.bf16 %v257
        %v290 = vunpack.c.l.bf16 %v258
        %v291 = vunpack.c.l.bf16 %v259
        %v292 = vunpack.c.l.bf16 %v260
        %v293 = vunpack.c.l.bf16 %v261
        %v294 = vunpack.c.l.bf16 %v262
        %v295 = vsub.f32 %v183, %v263
        %v296 = vsub.f32 %v184, %v264
        %v297 = vsub.f32 %v185, %v265
        %v298 = vsub.f32 %v186, %v266
        %v299 = vsub.f32 %v187, %v267
        %v300 = vsub.f32 %v188, %v268
        %v301 = vsub.f32 %v189, %v269
        %v302 = vsub.f32 %v190, %v270
        %v303 = vsub.f32 %v191, %v271
        %v304 = vsub.f32 %v192, %v272
        %v305 = vsub.f32 %v193, %v273
        %v306 = vsub.f32 %v194, %v274
        %v307 = vsub.f32 %v195, %v275
        %v308 = vsub.f32 %v196, %v276
        %v309 = vsub.f32 %v197, %v277
        %v310 = vsub.f32 %v198, %v278
        %v311 = vsub.f32 %v199, %v279
        %v312 = vsub.f32 %v200, %v280
        %v313 = vsub.f32 %v201, %v281
        %v314 = vsub.f32 %v202, %v282
        %v315 = vsub.f32 %v203, %v283
        %v316 = vsub.f32 %v204, %v284
        %v317 = vsub.f32 %v205, %v285
        %v318 = vsub.f32 %v206, %v286
        %v319 = vsub.f32 %v207, %v287
        %v320 = vsub.f32 %v208, %v288
        %v321 = vsub.f32 %v209, %v289
        %v322 = vsub.f32 %v210, %v290
        %v323 = vsub.f32 %v211, %v291
        %v324 = vsub.f32 %v212, %v292
        %v325 = vsub.f32 %v213, %v293
        %v326 = vsub.f32 %v214, %v294
        %v327 = vpack.c.bf16 %v296, %v295
        %v328 = vpack.c.bf16 %v298, %v297
        %v329 = vpack.c.bf16 %v300, %v299
        %v330 = vpack.c.bf16 %v302, %v301
        %v331 = vpack.c.bf16 %v304, %v303
        %v332 = vpack.c.bf16 %v306, %v305
        %v333 = vpack.c.bf16 %v308, %v307
        %v334 = vpack.c.bf16 %v310, %v309
        %v335 = vpack.c.bf16 %v312, %v311
        %v336 = vpack.c.bf16 %v314, %v313
        %v337 = vpack.c.bf16 %v316, %v315
        %v338 = vpack.c.bf16 %v318, %v317
        %v339 = vpack.c.bf16 %v320, %v319
        %v340 = vpack.c.bf16 %v322, %v321
        %v341 = vpack.c.bf16 %v324, %v323
        %v342 = vpack.c.bf16 %v326, %v325
        %v359 = vunpack.c.l.b16 %v215
        %v360 = vunpack.c.l.b16 %v216
        %v361 = vunpack.c.l.b16 %v217
        %v362 = vunpack.c.l.b16 %v218
        %v363 = vunpack.c.l.b16 %v219
        %v364 = vunpack.c.l.b16 %v220
        %v365 = vunpack.c.l.b16 %v221
        %v366 = vunpack.c.l.b16 %v222
        %v367 = vunpack.c.l.b16 %v223
        %v368 = vunpack.c.l.b16 %v224
        %v369 = vunpack.c.l.b16 %v225
        %v370 = vunpack.c.l.b16 %v226
        %v371 = vunpack.c.l.b16 %v227
        %v372 = vunpack.c.l.b16 %v228
        %v373 = vunpack.c.l.b16 %v229
        %v374 = vunpack.c.l.b16 %v230
        %v375 = vpack.c.b16 %v360, %v359
        %v376 = vpack.c.b16 %v362, %v361
        %v377 = vpack.c.b16 %v364, %v363
        %v378 = vpack.c.b16 %v366, %v365
        %v379 = vpack.c.b16 %v368, %v367
        %v380 = vpack.c.b16 %v370, %v369
        %v381 = vpack.c.b16 %v372, %v371
        %v382 = vpack.c.b16 %v374, %v373
        %391 = vmatpush.bf16.msra.mxu0 %v382
        %392 = vmatpush.bf16.msra.mxu0 %v381
        %393 = vmatpush.bf16.msra.mxu0 %v380
        %394 = vmatpush.bf16.msra.mxu0 %v379
        %395 = vmatpush.bf16.msra.mxu0 %v378
        %396 = vmatpush.bf16.msra.mxu0 %v377
        %397 = vmatpush.bf16.msra.mxu0 %v376
        %398 = vmatpush.bf16.msra.mxu0 %v375
        %399 = vmatmul.bf16.gmra.mxu0 %v327
        %v400 = vpop.f32.mrf.mxu0
        %v401 = vadd.f32 0.0, %v400
        %v402 = vpop.f32.mrf.mxu0
        %v403 = vadd.f32 0.0, %v402
        %404 = vmatmul.bf16.gmra.mxu0 %v328
        %v405 = vpop.f32.mrf.mxu0
        %v406 = vadd.f32 0.0, %v405
        %v407 = vpop.f32.mrf.mxu0
        %v408 = vadd.f32 0.0, %v407
        %409 = vmatmul.bf16.gmra.mxu0 %v329
        %v410 = vpop.f32.mrf.mxu0
        %v411 = vadd.f32 0.0, %v410
        %v412 = vpop.f32.mrf.mxu0
        %v413 = vadd.f32 0.0, %v412
        %414 = vmatmul.bf16.gmra.mxu0 %v330
        %v415 = vpop.f32.mrf.mxu0
        %v416 = vadd.f32 0.0, %v415
        %v417 = vpop.f32.mrf.mxu0
        %v418 = vadd.f32 0.0, %v417
        %419 = vmatmul.bf16.gmra.mxu0 %v331
        %v420 = vpop.f32.mrf.mxu0
        %v421 = vadd.f32 0.0, %v420
        %v422 = vpop.f32.mrf.mxu0
        %v423 = vadd.f32 0.0, %v422
        %424 = vmatmul.bf16.gmra.mxu0 %v332
        %v425 = vpop.f32.mrf.mxu0
        %v426 = vadd.f32 0.0, %v425
        %v427 = vpop.f32.mrf.mxu0
        %v428 = vadd.f32 0.0, %v427
        %429 = vmatmul.bf16.gmra.mxu0 %v333
        %v430 = vpop.f32.mrf.mxu0
        %v431 = vadd.f32 0.0, %v430
        %v432 = vpop.f32.mrf.mxu0
        %v433 = vadd.f32 0.0, %v432
        %434 = vmatmul.bf16.gmra.mxu0 %v334
        %v435 = vpop.f32.mrf.mxu0
        %v436 = vadd.f32 0.0, %v435
        %v437 = vpop.f32.mrf.mxu0
        %v438 = vadd.f32 0.0, %v437
        %439 = vmatmul.bf16.gmra.mxu0 %v335
        %v440 = vpop.f32.mrf.mxu0
        %v441 = vadd.f32 0.0, %v440
        %v442 = vpop.f32.mrf.mxu0
        %v443 = vadd.f32 0.0, %v442
        %444 = vmatmul.bf16.gmra.mxu0 %v336
        %v445 = vpop.f32.mrf.mxu0
        %v446 = vadd.f32 0.0, %v445
        %v447 = vpop.f32.mrf.mxu0
        %v448 = vadd.f32 0.0, %v447
        %449 = vmatmul.bf16.gmra.mxu0 %v337
        %v450 = vpop.f32.mrf.mxu0
        %v451 = vadd.f32 0.0, %v450
        %v452 = vpop.f32.mrf.mxu0
        %v453 = vadd.f32 0.0, %v452
        %454 = vmatmul.bf16.gmra.mxu0 %v338
        %v455 = vpop.f32.mrf.mxu0
        %v456 = vadd.f32 0.0, %v455
        %v457 = vpop.f32.mrf.mxu0
        %v458 = vadd.f32 0.0, %v457
        %459 = vmatmul.bf16.gmra.mxu0 %v339
        %v460 = vpop.f32.mrf.mxu0
        %v461 = vadd.f32 0.0, %v460
        %v462 = vpop.f32.mrf.mxu0
        %v463 = vadd.f32 0.0, %v462
        %464 = vmatmul.bf16.gmra.mxu0 %v340
        %v465 = vpop.f32.mrf.mxu0
        %v466 = vadd.f32 0.0, %v465
        %v467 = vpop.f32.mrf.mxu0
        %v468 = vadd.f32 0.0, %v467
        %469 = vmatmul.bf16.gmra.mxu0 %v341
        %v470 = vpop.f32.mrf.mxu0
        %v471 = vadd.f32 0.0, %v470
        %v472 = vpop.f32.mrf.mxu0
        %v473 = vadd.f32 0.0, %v472
        %474 = vmatmul.bf16.gmra.mxu0 %v342
        %v475 = vpop.f32.mrf.mxu0
        %v476 = vadd.f32 0.0, %v475
        %v477 = vpop.f32.mrf.mxu0
        %v478 = vadd.f32 0.0, %v477
        %479 = vdwg.mxu0
        %v512 = vunpack.c.l.b16 %v231
        %v513 = vunpack.c.l.b16 %v232
        %v514 = vunpack.c.l.b16 %v233
        %v515 = vunpack.c.l.b16 %v234
        %v516 = vunpack.c.l.b16 %v235
        %v517 = vunpack.c.l.b16 %v236
        %v518 = vunpack.c.l.b16 %v237
        %v519 = vunpack.c.l.b16 %v238
        %v520 = vunpack.c.l.b16 %v239
        %v521 = vunpack.c.l.b16 %v240
        %v522 = vunpack.c.l.b16 %v241
        %v523 = vunpack.c.l.b16 %v242
        %v524 = vunpack.c.l.b16 %v243
        %v525 = vunpack.c.l.b16 %v244
        %v526 = vunpack.c.l.b16 %v245
        %v527 = vunpack.c.l.b16 %v246
        %v528 = vunpack.c.l.b16 %v247
        %v529 = vunpack.c.l.b16 %v248
        %v530 = vunpack.c.l.b16 %v249
        %v531 = vunpack.c.l.b16 %v250
        %v532 = vunpack.c.l.b16 %v251
        %v533 = vunpack.c.l.b16 %v252
        %v534 = vunpack.c.l.b16 %v253
        %v535 = vunpack.c.l.b16 %v254
        %v536 = vunpack.c.l.b16 %v255
        %v537 = vunpack.c.l.b16 %v256
        %v538 = vunpack.c.l.b16 %v257
        %v539 = vunpack.c.l.b16 %v258
        %v540 = vunpack.c.l.b16 %v259
        %v541 = vunpack.c.l.b16 %v260
        %v542 = vunpack.c.l.b16 %v261
        %v543 = vunpack.c.l.b16 %v262
        %v544 = vpack.c.b16 %v513, %v512
        %v545 = vpack.c.b16 %v515, %v514
        %v546 = vpack.c.b16 %v517, %v516
        %v547 = vpack.c.b16 %v519, %v518
        %v548 = vpack.c.b16 %v521, %v520
        %v549 = vpack.c.b16 %v523, %v522
        %v550 = vpack.c.b16 %v525, %v524
        %v551 = vpack.c.b16 %v527, %v526
        %v552 = vpack.c.b16 %v529, %v528
        %v553 = vpack.c.b16 %v531, %v530
        %v554 = vpack.c.b16 %v533, %v532
        %v555 = vpack.c.b16 %v535, %v534
        %v556 = vpack.c.b16 %v537, %v536
        %v557 = vpack.c.b16 %v539, %v538
        %v558 = vpack.c.b16 %v541, %v540
        %v559 = vpack.c.b16 %v543, %v542
        %576 = vmatpush.bf16.msra.mxu0 %v382
        %577 = vmatpush.bf16.msra.mxu0 %v381
        %578 = vmatpush.bf16.msra.mxu0 %v380
        %579 = vmatpush.bf16.msra.mxu0 %v379
        %580 = vmatpush.bf16.msra.mxu0 %v378
        %581 = vmatpush.bf16.msra.mxu0 %v377
        %582 = vmatpush.bf16.msra.mxu0 %v376
        %583 = vmatpush.bf16.msra.mxu0 %v375
        %584 = vmatmul.bf16.gmra.mxu0 %v544
        %v585 = vpop.f32.mrf.mxu0
        %v586 = vadd.f32 %v401, %v585
        %v587 = vpop.f32.mrf.mxu0
        %v588 = vadd.f32 %v403, %v587
        %589 = vmatmul.bf16.gmra.mxu0 %v545
        %v590 = vpop.f32.mrf.mxu0
        %v591 = vadd.f32 %v406, %v590
        %v592 = vpop.f32.mrf.mxu0
        %v593 = vadd.f32 %v408, %v592
        %594 = vmatmul.bf16.gmra.mxu0 %v546
        %v595 = vpop.f32.mrf.mxu0
        %v596 = vadd.f32 %v411, %v595
        %v597 = vpop.f32.mrf.mxu0
        %v598 = vadd.f32 %v413, %v597
        %599 = vmatmul.bf16.gmra.mxu0 %v547
        %v600 = vpop.f32.mrf.mxu0
        %v601 = vadd.f32 %v416, %v600
        %v602 = vpop.f32.mrf.mxu0
        %v603 = vadd.f32 %v418, %v602
        %604 = vmatmul.bf16.gmra.mxu0 %v548
        %v605 = vpop.f32.mrf.mxu0
        %v606 = vadd.f32 %v421, %v605
        %v607 = vpop.f32.mrf.mxu0
        %v608 = vadd.f32 %v423, %v607
        %609 = vmatmul.bf16.gmra.mxu0 %v549
        %v610 = vpop.f32.mrf.mxu0
        %v611 = vadd.f32 %v426, %v610
        %v612 = vpop.f32.mrf.mxu0
        %v613 = vadd.f32 %v428, %v612
        %614 = vmatmul.bf16.gmra.mxu0 %v550
        %v615 = vpop.f32.mrf.mxu0
        %v616 = vadd.f32 %v431, %v615
        %v617 = vpop.f32.mrf.mxu0
        %v618 = vadd.f32 %v433, %v617
        %619 = vmatmul.bf16.gmra.mxu0 %v551
        %v620 = vpop.f32.mrf.mxu0
        %v621 = vadd.f32 %v436, %v620
        %v622 = vpop.f32.mrf.mxu0
        %v623 = vadd.f32 %v438, %v622
        %624 = vmatmul.bf16.gmra.mxu0 %v552
        %v625 = vpop.f32.mrf.mxu0
        %v626 = vadd.f32 %v441, %v625
        %v627 = vpop.f32.mrf.mxu0
        %v628 = vadd.f32 %v443, %v627
        %629 = vmatmul.bf16.gmra.mxu0 %v553
        %v630 = vpop.f32.mrf.mxu0
        %v631 = vadd.f32 %v446, %v630
        %v632 = vpop.f32.mrf.mxu0
        %v633 = vadd.f32 %v448, %v632
        %634 = vmatmul.bf16.gmra.mxu0 %v554
        %v635 = vpop.f32.mrf.mxu0
        %v636 = vadd.f32 %v451, %v635
        %v637 = vpop.f32.mrf.mxu0
        %v638 = vadd.f32 %v453, %v637
        %639 = vmatmul.bf16.gmra.mxu0 %v555
        %v640 = vpop.f32.mrf.mxu0
        %v641 = vadd.f32 %v456, %v640
        %v642 = vpop.f32.mrf.mxu0
        %v643 = vadd.f32 %v458, %v642
        %644 = vmatmul.bf16.gmra.mxu0 %v556
        %v645 = vpop.f32.mrf.mxu0
        %v646 = vadd.f32 %v461, %v645
        %v647 = vpop.f32.mrf.mxu0
        %v648 = vadd.f32 %v463, %v647
        %649 = vmatmul.bf16.gmra.mxu0 %v557
        %v650 = vpop.f32.mrf.mxu0
        %v651 = vadd.f32 %v466, %v650
        %v652 = vpop.f32.mrf.mxu0
        %v653 = vadd.f32 %v468, %v652
        %654 = vmatmul.bf16.gmra.mxu0 %v558
        %v655 = vpop.f32.mrf.mxu0
        %v656 = vadd.f32 %v471, %v655
        %v657 = vpop.f32.mrf.mxu0
        %v658 = vadd.f32 %v473, %v657
        %659 = vmatmul.bf16.gmra.mxu0 %v559
        %v660 = vpop.f32.mrf.mxu0
        %v661 = vadd.f32 %v476, %v660
        %v662 = vpop.f32.mrf.mxu0
        %v663 = vadd.f32 %v478, %v662
        %664 = vdwg.mxu0
        %v665 = vrcp.pop %v586
        %v666 = vrcp.pop %v588
        %v667 = vrcp.pop %v591
        %v668 = vrcp.pop %v593
        %v669 = vrcp.pop %v596
        %v670 = vrcp.pop %v598
        %v671 = vrcp.pop %v601
        %v672 = vrcp.pop %v603
        %v673 = vrcp.pop %v606
        %v674 = vrcp.pop %v608
        %v675 = vrcp.pop %v611
        %v676 = vrcp.pop %v613
        %v677 = vrcp.pop %v616
        %v678 = vrcp.pop %v618
        %v679 = vrcp.pop %v621
        %v680 = vrcp.pop %v623
        %v681 = vrcp.pop %v626
        %v682 = vrcp.pop %v628
        %v683 = vrcp.pop %v631
        %v684 = vrcp.pop %v633
        %v685 = vrcp.pop %v636
        %v686 = vrcp.pop %v638
        %v687 = vrcp.pop %v641
        %v688 = vrcp.pop %v643
        %v689 = vrcp.pop %v646
        %v690 = vrcp.pop %v648
        %v691 = vrcp.pop %v651
        %v692 = vrcp.pop %v653
        %v693 = vrcp.pop %v656
        %v694 = vrcp.pop %v658
        %v695 = vrcp.pop %v661
        %v696 = vrcp.pop %v663
        %v697 = vmul.f32 %v586, %v665
        %v698 = vmul.f32 %v588, %v666
        %v699 = vmul.f32 %v591, %v667
        %v700 = vmul.f32 %v593, %v668
        %v701 = vmul.f32 %v596, %v669
        %v702 = vmul.f32 %v598, %v670
        %v703 = vmul.f32 %v601, %v671
        %v704 = vmul.f32 %v603, %v672
        %v705 = vmul.f32 %v606, %v673
        %v706 = vmul.f32 %v608, %v674
        %v707 = vmul.f32 %v611, %v675
        %v708 = vmul.f32 %v613, %v676
        %v709 = vmul.f32 %v616, %v677
        %v710 = vmul.f32 %v618, %v678
        %v711 = vmul.f32 %v621, %v679
        %v712 = vmul.f32 %v623, %v680
        %v713 = vmul.f32 %v626, %v681
        %v714 = vmul.f32 %v628, %v682
        %v715 = vmul.f32 %v631, %v683
        %v716 = vmul.f32 %v633, %v684
        %v717 = vmul.f32 %v636, %v685
        %v718 = vmul.f32 %v638, %v686
        %v719 = vmul.f32 %v641, %v687
        %v720 = vmul.f32 %v643, %v688
        %v721 = vmul.f32 %v646, %v689
        %v722 = vmul.f32 %v648, %v690
        %v723 = vmul.f32 %v651, %v691
        %v724 = vmul.f32 %v653, %v692
        %v725 = vmul.f32 %v656, %v693
        %v726 = vmul.f32 %v658, %v694
        %v727 = vmul.f32 %v661, %v695
        %v728 = vmul.f32 %v663, %v696
        %v729 = vsub.f32 2.0, %v697
        %v730 = vsub.f32 2.0, %v698
        %v731 = vsub.f32 2.0, %v699
        %v732 = vsub.f32 2.0, %v700
        %v733 = vsub.f32 2.0, %v701
        %v734 = vsub.f32 2.0, %v702
        %v735 = vsub.f32 2.0, %v703
        %v736 = vsub.f32 2.0, %v704
        %v737 = vsub.f32 2.0, %v705
        %v738 = vsub.f32 2.0, %v706
        %v739 = vsub.f32 2.0, %v707
        %v740 = vsub.f32 2.0, %v708
        %v741 = vsub.f32 2.0, %v709
        %v742 = vsub.f32 2.0, %v710
        %v743 = vsub.f32 2.0, %v711
        %v744 = vsub.f32 2.0, %v712
        %v745 = vsub.f32 2.0, %v713
        %v746 = vsub.f32 2.0, %v714
        %v747 = vsub.f32 2.0, %v715
        %v748 = vsub.f32 2.0, %v716
        %v749 = vsub.f32 2.0, %v717
        %v750 = vsub.f32 2.0, %v718
        %v751 = vsub.f32 2.0, %v719
        %v752 = vsub.f32 2.0, %v720
        %v753 = vsub.f32 2.0, %v721
        %v754 = vsub.f32 2.0, %v722
        %v755 = vsub.f32 2.0, %v723
        %v756 = vsub.f32 2.0, %v724
        %v757 = vsub.f32 2.0, %v725
        %v758 = vsub.f32 2.0, %v726
        %v759 = vsub.f32 2.0, %v727
        %v760 = vsub.f32 2.0, %v728
        %v761 = vmul.f32 %v665, %v729
        %v762 = vmul.f32 %v666, %v730
        %v763 = vmul.f32 %v667, %v731
        %v764 = vmul.f32 %v668, %v732
        %v765 = vmul.f32 %v669, %v733
        %v766 = vmul.f32 %v670, %v734
        %v767 = vmul.f32 %v671, %v735
        %v768 = vmul.f32 %v672, %v736
        %v769 = vmul.f32 %v673, %v737
        %v770 = vmul.f32 %v674, %v738
        %v771 = vmul.f32 %v675, %v739
        %v772 = vmul.f32 %v676, %v740
        %v773 = vmul.f32 %v677, %v741
        %v774 = vmul.f32 %v678, %v742
        %v775 = vmul.f32 %v679, %v743
        %v776 = vmul.f32 %v680, %v744
        %v777 = vmul.f32 %v681, %v745
        %v778 = vmul.f32 %v682, %v746
        %v779 = vmul.f32 %v683, %v747
        %v780 = vmul.f32 %v684, %v748
        %v781 = vmul.f32 %v685, %v749
        %v782 = vmul.f32 %v686, %v750
        %v783 = vmul.f32 %v687, %v751
        %v784 = vmul.f32 %v688, %v752
        %v785 = vmul.f32 %v689, %v753
        %v786 = vmul.f32 %v690, %v754
        %v787 = vmul.f32 %v691, %v755
        %v788 = vmul.f32 %v692, %v756
        %v789 = vmul.f32 %v693, %v757
        %v790 = vmul.f32 %v694, %v758
        %v791 = vmul.f32 %v695, %v759
        %v792 = vmul.f32 %v696, %v760
        %v793 = vmul.f32 %v183, %v761
        %v794 = vmul.f32 %v184, %v762
        %v795 = vmul.f32 %v185, %v763
        %v796 = vmul.f32 %v186, %v764
        %v797 = vmul.f32 %v187, %v765
        %v798 = vmul.f32 %v188, %v766
        %v799 = vmul.f32 %v189, %v767
        %v800 = vmul.f32 %v190, %v768
        %v801 = vmul.f32 %v191, %v769
        %v802 = vmul.f32 %v192, %v770
        %v803 = vmul.f32 %v193, %v771
        %v804 = vmul.f32 %v194, %v772
        %v805 = vmul.f32 %v195, %v773
        %v806 = vmul.f32 %v196, %v774
        %v807 = vmul.f32 %v197, %v775
        %v808 = vmul.f32 %v198, %v776
        %v809 = vmul.f32 %v199, %v777
        %v810 = vmul.f32 %v200, %v778
        %v811 = vmul.f32 %v201, %v779
        %v812 = vmul.f32 %v202, %v780
        %v813 = vmul.f32 %v203, %v781
        %v814 = vmul.f32 %v204, %v782
        %v815 = vmul.f32 %v205, %v783
        %v816 = vmul.f32 %v206, %v784
        %v817 = vmul.f32 %v207, %v785
        %v818 = vmul.f32 %v208, %v786
        %v819 = vmul.f32 %v209, %v787
        %v820 = vmul.f32 %v210, %v788
        %v821 = vmul.f32 %v211, %v789
        %v822 = vmul.f32 %v212, %v790
        %v823 = vmul.f32 %v213, %v791
        %v824 = vmul.f32 %v214, %v792
        %825 = vst [vmem:[%s180] sm:$0xff] %v793
        %826 = vst [vmem:[%s180 + $0x8] sm:$0xff] %v794
        %827 = vst [vmem:[%s180 + $0x10] sm:$0xff] %v795
        %828 = vst [vmem:[%s180 + $0x18] sm:$0xff] %v796
        %829 = vst [vmem:[%s180 + $0x20] sm:$0xff] %v797
        %830 = vst [vmem:[%s180 + $0x28] sm:$0xff] %v798
        %831 = vst [vmem:[%s180 + $0x30] sm:$0xff] %v799
        %832 = vst [vmem:[%s180 + $0x38] sm:$0xff] %v800
        %833 = vst [vmem:[%s180 + $0x40] sm:$0xff] %v801
        %834 = vst [vmem:[%s180 + $0x48] sm:$0xff] %v802
        %835 = vst [vmem:[%s180 + $0x50] sm:$0xff] %v803
        %836 = vst [vmem:[%s180 + $0x58] sm:$0xff] %v804
        %837 = vst [vmem:[%s180 + $0x60] sm:$0xff] %v805
        %838 = vst [vmem:[%s180 + $0x68] sm:$0xff] %v806
        %839 = vst [vmem:[%s180 + $0x70] sm:$0xff] %v807
        %840 = vst [vmem:[%s180 + $0x78] sm:$0xff] %v808
        %841 = vst [vmem:[%s180 + $0x80] sm:$0xff] %v809
        %842 = vst [vmem:[%s180 + $0x88] sm:$0xff] %v810
        %843 = vst [vmem:[%s180 + $0x90] sm:$0xff] %v811
        %844 = vst [vmem:[%s180 + $0x98] sm:$0xff] %v812
        %845 = vst [vmem:[%s180 + $0xa0] sm:$0xff] %v813
        %846 = vst [vmem:[%s180 + $0xa8] sm:$0xff] %v814
        %847 = vst [vmem:[%s180 + $0xb0] sm:$0xff] %v815
        %848 = vst [vmem:[%s180 + $0xb8] sm:$0xff] %v816
        %849 = vst [vmem:[%s180 + $0xc0] sm:$0xff] %v817
        %850 = vst [vmem:[%s180 + $0xc8] sm:$0xff] %v818
        %851 = vst [vmem:[%s180 + $0xd0] sm:$0xff] %v819
        %852 = vst [vmem:[%s180 + $0xd8] sm:$0xff] %v820
        %853 = vst [vmem:[%s180 + $0xe0] sm:$0xff] %v821
        %854 = vst [vmem:[%s180 + $0xe8] sm:$0xff] %v822
        %855 = vst [vmem:[%s180 + $0xf0] sm:$0xff] %v823
        %856 = vst [vmem:[%s180 + $0xf8] sm:$0xff] %v824
        %s857 = sand.u32 %s75, 1
        %s858 = scalar_lea.sflag [#allocation4], %s857
        %s859 = sand.u32 %s75, 1
        %s860 = smul.addr %s859, 256
        %s861 = scalar_lea.vmem [#allocation7], %s860
        // Predicated region
        $region37: #{tpu_custom_call.1} parent=27 // pred_check
          %p862 = pneg %p85
        $region38: #{tpu_custom_call.1} parent=27 // pred_check_branch
          %864 = sbr.rel (%p862) target = $region40
        $region39: #{tpu_custom_call.1} parent=27 // pred_region
          %s865 = smul.u32 32, %s20
          %867 = vsyncadd %s858, 0
          %s868 = smul.addr %s865, 8
          %s869 = scalar_lea.hbm %s2, %s868
          %s870 = sshll.u32 %s861, 4
          %s871 = int_to_ptr.vmem [resolvable:$true] %s870
          %s872 = sshll.u32 %s869, 4
          %s873 = int_to_ptr.hbm [resolvable:$true] %s872
          %878 = dma.vmem_to_hbm [thread:$0]  %s871, 4096, %s873, %s858, 128, 128, 8
        $region40: #{tpu_custom_call.1} parent=27 // pred_fallthru
          _
      $region28: #{tpu_custom_call.1} parent=5 // pred_fallthru
        _
      %p879 = scmp.le.s32.totalorder 2, %s15
      // Predicated region
      $region41: #{tpu_custom_call.1} parent=5 // pred_check
        %p880 = pneg %p879
      $region42: #{tpu_custom_call.1} parent=5 // pred_check_branch
        %882 = sbr.rel (%p880) target = $region44
      $region43: #{tpu_custom_call.1} parent=5 // pred_region
        %s883 = ssub.s32 %s15, 2
        // Predicated region
        $region45: #{tpu_custom_call.1} parent=43 // pred_check
          %p884 = pneg %p91
        $region46: #{tpu_custom_call.1} parent=43 // pred_check_branch
          %886 = sbr.rel (%p884) target = $region48
        $region47: #{tpu_custom_call.1} parent=43 // pred_region
          %s887 = sand.u32 %s76, 1
          %s888 = scalar_lea.sflag [#allocation4], %s887
          %s889 = sand.u32 %s76, 1
          %s890 = smul.addr %s889, 256
          %s891 = scalar_lea.vmem [#allocation7], %s890
          %893 = dma.done %s888, 4096
        $region48: #{tpu_custom_call.1} parent=43 // pred_fallthru
          _
      $region44: #{tpu_custom_call.1} parent=5 // pred_fallthru
        _
    $region6: #{tpu_custom_call.1} parent=1 // loop_footer
      %s19 = sadd.s32 1, %s15
    $region7: #{tpu_custom_call.1} parent=1 // loop_footer_branch
      %14 = sbr.rel target = $region3
    $region8: #{tpu_custom_call.1} parent=1 // loop_exit
      _
    %894 = vsyncpa [#allocation3], 1
    %s895 = scalar_lea.sflag [#allocation3], 1
    %896 = vsyncpa %s895, 1
    %897 = vsyncpa [#allocation6], 1
    %s898 = scalar_lea.sflag [#allocation6], 1
    %899 = vsyncpa %s898, 1
    %900 = vsyncpa [#allocation4], 1
    %s901 = scalar_lea.sflag [#allocation4], 1
    %902 = vsyncpa %s901, 1

</llo_original>
